<compile_context>
chip_gen: v5e
topology: v5e:2x2
jax: 0.10.0
libtpu: 0.0.40
codegen_flags: <defaults>
</compile_context>

<pallas_src>
import jax
import jax.numpy as jnp
import numpy as np
from jax.experimental import pallas as pl
from jax.experimental.pallas import tpu as pltpu


def _round_up(x, m):
    return (x + m - 1) // m * m


def _vmem_limit_bytes():
    """Per-generation VMEM budget with headroom for Mosaic-internal scratch."""
    cap = 64 * 1024 * 1024
    try:
        info = pltpu.get_tpu_info()
        cap = int(getattr(info, "vmem_capacity_bytes", cap))
    except Exception:
        pass
    # ~75% of physical: ~48 MiB on v7x (64 MiB/TC), ~96 MiB on v5e/v6e (128 MiB).
    return max(32 * 1024 * 1024, int(min(cap * 3 // 4, 112 * 1024 * 1024)))


def encoder_projection_kernel(f_ref, w1_ref, b1_ref, w2_ref, b2_ref, o_ref,
                              pooled_ref):
    """One (batch-tile, HW-chunk) grid step.

    f_ref:      (TB, HW_CHUNK, D) bf16 feature chunk (pipelined over axis 1)
    w1_ref:     (D, D)   bf16, 1/HW pre-folded, resident whole-array in VMEM
    b1_ref:     (1, D)   f32,  resident
    w2_ref:     (D, OUTp) bf16, resident
    b2_ref:     (1, OUTp) f32,  resident
    o_ref:      (TB, OUTp) f32 output block (same block across axis 1)
    pooled_ref: (TB, D) f32 scratch accumulator for the spatial sum
    """
    j = pl.program_id(1)

    @pl.when(j == 0)
    def _init():
        pooled_ref[...] = jnp.zeros_like(pooled_ref)

    # Streamed adaptive-average-pool: accumulate the spatial sum of this HW
    # chunk in f32, widening only 8 spatial rows at a time so no large f32
    # temporary is ever materialized.  (1/HW is folded into w1.)
    chunk = f_ref.shape[1]
    psum = None
    for s in range(0, chunk, 8):
        part = jnp.sum(f_ref[:, s:s + 8, :].astype(jnp.float32), axis=1)
        psum = part if psum is None else psum + part
    pooled_ref[...] += psum

    @pl.when(j == pl.num_programs(1) - 1)
    def _head():
        pooled = pooled_ref[...]                                  # (TB, D) f32
        # Linear -> ReLU -> Linear: bf16 MXU operands, f32 accumulation,
        # f32 elementwise (v5e's VPU/EUP has no bf16).
        h = jnp.dot(pooled.astype(jnp.bfloat16), w1_ref[...],
                    preferred_element_type=jnp.float32)           # (TB, D)
        h = jnp.maximum(h + b1_ref[...], 0.0)
        y = jnp.dot(h.astype(jnp.bfloat16), w2_ref[...],
                    preferred_element_type=jnp.float32)           # (TB, OUTp)
        y = y + b2_ref[...]
        # F.normalize(y, dim=1) == y * rsqrt(max(||y||^2, 1e-24)).
        ss = jnp.sum(y * y, axis=1, keepdims=True)
        o_ref[...] = (y * jax.lax.rsqrt(jnp.maximum(ss, 1e-24))).astype(
            o_ref.dtype)


def encoder_projection_forward(feat, w1, b1, w2, b2, *, tile_b=128,
                               hw_chunk=16):
    """Projection head of EncoderProjectionNetwork (vision branch).

    feat: (B, HW, D) backbone feature map — ideally already bf16 from the
          producer so no extra HBM round-trip is spent on the cast.
    w1: (D, D), b1: (1, D) or (D,), w2: (D, OUT), b2: (1, OUT) or (OUT,),
    stored [in, out] so the kernel computes x @ W + b.
    Returns (B, OUT) float32, L2-normalized along dim 1.
    """
    B, HW, D = feat.shape
    OUT = w2.shape[1]

    if feat.dtype != jnp.bfloat16:
        # Fallback only; prefer the backbone emitting bf16 so XLA fuses this
        # into the producing op instead of re-reading the f32 map from HBM.
        feat = feat.astype(jnp.bfloat16)

    # Fold the 1/HW adaptive-avg-pool scale into the first linear layer
    # (removes a (TB, D) VPU multiply per tile).  bf16 MXU operands.
    w1 = (w1.astype(jnp.float32) * (1.0 / HW)).astype(jnp.bfloat16)
    w2 = w2.astype(jnp.bfloat16)
    b1 = b1.reshape(1, D).astype(jnp.float32)
    b2 = b2.reshape(1, OUT).astype(jnp.float32)

    # Lane-dense output: pad OUT to a multiple of 128 (padded weight/bias
    # columns are zero, so they don't perturb the L2 norm); slice at the end.
    out_p = _round_up(OUT, 128)
    if out_p != OUT:
        w2 = jnp.pad(w2, ((0, 0), (0, out_p - OUT)))
        b2 = jnp.pad(b2, ((0, 0), (0, out_p - OUT)))

    # Batch tile: multiple of 16 (bf16 row packing into the MXU), capped so
    # the grid has >=2 batch tiles whenever B allows it (megacore/v7x 2 TCs).
    tb = min(tile_b, max(16, _round_up((B + 1) // 2, 16)))
    b_pad = _round_up(B, tb)

    # HW chunking: stream the spatial reduction in small chunks so the
    # per-step feature block (and its f32 widening) stays small in VMEM.
    hw_chunk = max(16, _round_up(min(hw_chunk, HW), 16))
    hw_pad = _round_up(HW, hw_chunk)

    if b_pad != B or hw_pad != HW:
        # Zero padding: padded spatial rows add 0 to the pooled sum; padded
        # batch rows produce harmless values that are sliced off below.
        feat = jnp.pad(feat, ((0, b_pad - B), (0, hw_pad - HW), (0, 0)))

    grid = (b_pad // tb, hw_pad // hw_chunk)

    flops = (b_pad * hw_pad * D            # pooling adds
             + 2 * b_pad * D * D           # first matmul
             + 2 * b_pad * D * out_p)      # second matmul
    bytes_accessed = (feat.size * 2 + w1.size * 2 + w2.size * 2
                      + b1.size * 4 + b2.size * 4 + b_pad * out_p * 4)
    cost = pl.CostEstimate(flops=flops, transcendentals=b_pad,
                           bytes_accessed=bytes_accessed)

    out = pl.pallas_call(
        encoder_projection_kernel,
        out_shape=jax.ShapeDtypeStruct((b_pad, out_p), jnp.float32),
        grid=grid,
        in_specs=[
            # Feature chunks: pipelined / double-buffered over (batch, HW).
            pl.BlockSpec((tb, hw_chunk, D), lambda i, j: (i, j, 0)),
            # Weights & biases: whole-array resident in VMEM (single copy,
            # outside the pipeline — loaded once, never re-fetched).
            pl.BlockSpec(memory_space=pltpu.MemorySpace.VMEM),   # w1
            pl.BlockSpec(memory_space=pltpu.MemorySpace.VMEM),   # b1
            pl.BlockSpec(memory_space=pltpu.MemorySpace.VMEM),   # w2
            pl.BlockSpec(memory_space=pltpu.MemorySpace.VMEM),   # b2
        ],
        # Output block is constant across the HW axis (accumulator pattern);
        # written only on the last chunk, written back once per batch tile.
        out_specs=pl.BlockSpec((tb, out_p), lambda i, j: (i, 0)),
        scratch_shapes=[pltpu.VMEM((tb, D), jnp.float32)],
        compiler_params=pltpu.CompilerParams(
            # Batch tiles are independent; HW chunks are a reduction.
            dimension_semantics=("parallel", "arbitrary"),
            vmem_limit_bytes=_vmem_limit_bytes(),
        ),
        cost_estimate=cost,
    )(feat, w1, b1, w2, b2)

    return out[:B, :OUT]


def _reference(feat, w1, b1, w2, b2):
    """Pure-JAX reference mirroring the kernel's bf16 rounding choices."""
    B, HW, D = feat.shape
    f = feat.astype(jnp.bfloat16).astype(jnp.float32)
    pooled = jnp.sum(f, axis=1)                                   # spatial sum
    w1s = (w1.astype(jnp.float32) / HW).astype(jnp.bfloat16).astype(jnp.float32)
    w2s = w2.astype(jnp.bfloat16).astype(jnp.float32)
    h = jnp.dot(pooled.astype(jnp.bfloat16).astype(jnp.float32), w1s) \
        + b1.reshape(1, -1)
    h = jnp.maximum(h, 0.0)
    y = jnp.dot(h.astype(jnp.bfloat16).astype(jnp.float32), w2s) \
        + b2.reshape(1, -1)
    n = jnp.sqrt(jnp.sum(y * y, axis=1, keepdims=True))
    return y / jnp.maximum(n, 1e-12)


if __name__ == "__main__":
    # Small, TPU-friendly stand-in sizes (real resnet50 head: D=2048, HW=7*7,
    # OUT=128).  HW=20 exercises the chunked/padded spatial-reduction path.
    B, HW, D, OUT = 4, 20, 256, 128

    key = jax.random.PRNGKey(0)
    k_feat, k_w1, k_b1, k_w2, k_b2 = jax.random.split(key, 5)

    # Synthetic backbone feature map (backbone trunk not translated), emitted
    # directly in bf16 so the wrapper does no extra HBM-round-trip cast.
    feat = jax.random.normal(k_feat, (B, HW, D),
                             dtype=jnp.float32).astype(jnp.bfloat16)

    # Deterministic nn.Linear-style init: U(-1/sqrt(fan_in), 1/sqrt(fan_in)).
    bound = 1.0 / np.sqrt(D)
    w1 = jax.random.uniform(k_w1, (D, D), jnp.float32, -bound, bound)
    b1 = jax.random.uniform(k_b1, (1, D), jnp.float32, -bound, bound)
    w2 = jax.random.uniform(k_w2, (D, OUT), jnp.float32, -bound, bound)
    b2 = jax.random.uniform(k_b2, (1, OUT), jnp.float32, -bound, bound)

    out = encoder_projection_forward(feat, w1, b1, w2, b2)
    out = jax.block_until_ready(out)
    assert out.shape == (B, OUT)

    ref = jax.block_until_ready(_reference(feat, w1, b1, w2, b2))
    np.testing.assert_allclose(np.asarray(out), np.asarray(ref),
                               rtol=2e-2, atol=2e-2)
    # Rows are unit-norm (normalization is done in f32 regardless of bf16 ops).
    np.testing.assert_allclose(np.linalg.norm(np.asarray(out), axis=1),
                               np.ones(B), rtol=1e-4, atol=1e-4)

    print("KERNEL_OK")
</pallas_src>

<mosaic_0001>
module attributes {stable_mosaic.version = 11 : i64} {
  func.func @encoder_projection_kernel(%arg0: i32, %arg1: i32, %arg2: memref<16x16x256xbf16, #tpu.memory_space<vmem>>, %arg3: memref<256x256xbf16, #tpu.memory_space<vmem>>, %arg4: memref<1x256xf32, #tpu.memory_space<vmem>>, %arg5: memref<256x128xbf16, #tpu.memory_space<vmem>>, %arg6: memref<1x128xf32, #tpu.memory_space<vmem>>, %arg7: memref<16x128xf32, #tpu.memory_space<vmem>>, %arg8: memref<16x256xf32, #tpu.memory_space<vmem>>) attributes {dimension_semantics = [#tpu.dimension_semantics<parallel>, #tpu.dimension_semantics<arbitrary>], iteration_bounds = array<i64: 1, 2>, scalar_prefetch = 0 : i64, scratch_operands = 1 : i64, tpu.core_type = #tpu.core_type<tc>, window_params = [{transform_indices = @transform_0, window_bounds = array<i64: 16, 16, 256>}, {pipeline_mode = #tpu.pipeline_mode<synchronous>, transform_indices = @transform_1, window_bounds = array<i64: 256, 256>}, {pipeline_mode = #tpu.pipeline_mode<synchronous>, transform_indices = @transform_2, window_bounds = array<i64: 1, 256>}, {pipeline_mode = #tpu.pipeline_mode<synchronous>, transform_indices = @transform_3, window_bounds = array<i64: 256, 128>}, {pipeline_mode = #tpu.pipeline_mode<synchronous>, transform_indices = @transform_4, window_bounds = array<i64: 1, 128>}, {transform_indices = @transform_5, window_bounds = array<i64: 16, 128>}]} {
    %c0_i32 = arith.constant 0 : i32
    %0 = arith.cmpi eq, %arg1, %c0_i32 : i32
    %1 = arith.extui %0 : i1 to i32
    %c0_i32_0 = arith.constant 0 : i32
    %2 = arith.cmpi ne, %1, %c0_i32_0 : i32
    scf.if %2 {
      %cst_11 = arith.constant 0.000000e+00 : f32
      %16 = vector.broadcast %cst_11 : f32 to vector<16x256xf32>
      %c0_12 = arith.constant 0 : index
      %c0_13 = arith.constant 0 : index
      %17 = vector.load %arg8[%c0_12, %c0_13] : memref<16x256xf32, #tpu.memory_space<vmem>>, vector<16x256xf32>
      tpu.vector_store %arg8[%c0_12, %c0_13], %16 {strides = array<i32>} : memref<16x256xf32, #tpu.memory_space<vmem>>, vector<16x256xf32>,
    } else {
    }
    %c0 = arith.constant 0 : index
    %c0_1 = arith.constant 0 : index
    %c0_2 = arith.constant 0 : index
    %3 = vector.load %arg2[%c0, %c0_1, %c0_2] : memref<16x16x256xbf16, #tpu.memory_space<vmem>>, vector<16x8x256xbf16>
    %4 = arith.extf %3 : vector<16x8x256xbf16> to vector<16x8x256xf32>
    %cst = arith.constant dense<0.000000e+00> : vector<16x256xf32>
    %5 = vector.multi_reduction <add>, %4, %cst [1] : vector<16x8x256xf32> to vector<16x256xf32>
    %c0_3 = arith.constant 0 : index
    %c8 = arith.constant 8 : index
    %c0_4 = arith.constant 0 : index
    %6 = vector.load %arg2[%c0_3, %c8, %c0_4] : memref<16x16x256xbf16, #tpu.memory_space<vmem>>, vector<16x8x256xbf16>
    %7 = arith.extf %6 : vector<16x8x256xbf16> to vector<16x8x256xf32>
    %cst_5 = arith.constant dense<0.000000e+00> : vector<16x256xf32>
    %8 = vector.multi_reduction <add>, %7, %cst_5 [1] : vector<16x8x256xf32> to vector<16x256xf32>
    %9 = arith.addf %5, %8 : vector<16x256xf32>
    %c0_6 = arith.constant 0 : index
    %c0_7 = arith.constant 0 : index
    %10 = vector.load %arg8[%c0_6, %c0_7] : memref<16x256xf32, #tpu.memory_space<vmem>>, vector<16x256xf32>
    %11 = arith.addf %10, %9 : vector<16x256xf32>
    %c0_8 = arith.constant 0 : index
    %c0_9 = arith.constant 0 : index
    %12 = vector.load %arg8[%c0_8, %c0_9] : memref<16x256xf32, #tpu.memory_space<vmem>>, vector<16x256xf32>
    tpu.vector_store %arg8[%c0_8, %c0_9], %11 {strides = array<i32>} : memref<16x256xf32, #tpu.memory_space<vmem>>, vector<16x256xf32>,
    %c1_i32 = arith.constant 1 : i32
    %13 = arith.cmpi eq, %arg1, %c1_i32 : i32
    %14 = arith.extui %13 : i1 to i32
    %c0_i32_10 = arith.constant 0 : i32
    %15 = arith.cmpi ne, %14, %c0_i32_10 : i32
    scf.if %15 {
      %c0_11 = arith.constant 0 : index
      %c0_12 = arith.constant 0 : index
      %16 = vector.load %arg8[%c0_11, %c0_12] : memref<16x256xf32, #tpu.memory_space<vmem>>, vector<16x256xf32>
      %17 = arith.truncf %16 : vector<16x256xf32> to vector<16x256xbf16>
      %c0_13 = arith.constant 0 : index
      %c0_14 = arith.constant 0 : index
      %18 = vector.load %arg3[%c0_13, %c0_14] : memref<256x256xbf16, #tpu.memory_space<vmem>>, vector<256x256xbf16>
      %cst_15 = arith.constant dense<0.000000e+00> : vector<16x256xf32>
      %19 = tpu.matmul %17, %18, %cst_15 {dimension_numbers = #tpu.dot_dimension_numbers<[1], [0], [0], [1], [0, 0, 1, 1], [], []>} : vector<16x256xbf16>, vector<256x256xbf16>, vector<16x256xf32> -> vector<16x256xf32>
      %c0_16 = arith.constant 0 : index
      %c0_17 = arith.constant 0 : index
      %20 = vector.load %arg4[%c0_16, %c0_17] : memref<1x256xf32, #tpu.memory_space<vmem>>, vector<1x256xf32>
      %21 = vector.broadcast %20 : vector<1x256xf32> to vector<16x256xf32>
      %22 = arith.addf %19, %21 : vector<16x256xf32>
      %cst_18 = arith.constant 0.000000e+00 : f32
      %23 = vector.broadcast %cst_18 : f32 to vector<16x256xf32>
      %24 = arith.maximumf %22, %23 : vector<16x256xf32>
      %25 = arith.truncf %24 : vector<16x256xf32> to vector<16x256xbf16>
      %c0_19 = arith.constant 0 : index
      %c0_20 = arith.constant 0 : index
      %26 = vector.load %arg5[%c0_19, %c0_20] : memref<256x128xbf16, #tpu.memory_space<vmem>>, vector<256x128xbf16>
      %cst_21 = arith.constant dense<0.000000e+00> : vector<16x128xf32>
      %27 = tpu.matmul %25, %26, %cst_21 {dimension_numbers = #tpu.dot_dimension_numbers<[1], [0], [0], [1], [0, 0, 1, 1], [], []>} : vector<16x256xbf16>, vector<256x128xbf16>, vector<16x128xf32> -> vector<16x128xf32>
      %c0_22 = arith.constant 0 : index
      %c0_23 = arith.constant 0 : index
      %28 = vector.load %arg6[%c0_22, %c0_23] : memref<1x128xf32, #tpu.memory_space<vmem>>, vector<1x128xf32>
      %29 = vector.broadcast %28 : vector<1x128xf32> to vector<16x128xf32>
      %30 = arith.addf %27, %29 : vector<16x128xf32>
      %31 = arith.mulf %30, %30 : vector<16x128xf32>
      %cst_24 = arith.constant dense<0.000000e+00> : vector<16xf32>
      %32 = vector.multi_reduction <add>, %31, %cst_24 [1] : vector<16x128xf32> to vector<16xf32>
      %33 = vector.shape_cast %32 : vector<16xf32> to vector<16x1xf32>
      %cst_25 = arith.constant 1.000000e-24 : f32
      %34 = vector.broadcast %cst_25 : f32 to vector<16x1xf32>
      %35 = arith.maximumf %33, %34 : vector<16x1xf32>
      %36 = math.rsqrt %35 : vector<16x1xf32>
      %37 = vector.broadcast %36 : vector<16x1xf32> to vector<16x128xf32>
      %38 = arith.mulf %30, %37 : vector<16x128xf32>
      %c0_26 = arith.constant 0 : index
      %c0_27 = arith.constant 0 : index
      %39 = vector.load %arg7[%c0_26, %c0_27] : memref<16x128xf32, #tpu.memory_space<vmem>>, vector<16x128xf32>
      tpu.vector_store %arg7[%c0_26, %c0_27], %38 {strides = array<i32>} : memref<16x128xf32, #tpu.memory_space<vmem>>, vector<16x128xf32>,
    } else {
    }
    return
  }
  func.func @transform_0(%arg0: i32, %arg1: i32) -> (i32, i32, i32) {
    %c0_i32 = arith.constant 0 : i32
    %c0_i32_0 = arith.constant 0 : i32
    return %arg0, %arg1, %c0_i32 : i32, i32, i32
  }
  func.func @transform_1(%arg0: i32, %arg1: i32) -> (i32, i32) {
    %c0_i32 = arith.constant 0 : i32
    %c0_i32_0 = arith.constant 0 : i32
    %c0_i32_1 = arith.constant 0 : i32
    return %c0_i32, %c0_i32_0 : i32, i32
  }
  func.func @transform_2(%arg0: i32, %arg1: i32) -> (i32, i32) {
    %c0_i32 = arith.constant 0 : i32
    %c0_i32_0 = arith.constant 0 : i32
    %c0_i32_1 = arith.constant 0 : i32
    return %c0_i32, %c0_i32_0 : i32, i32
  }
  func.func @transform_3(%arg0: i32, %arg1: i32) -> (i32, i32) {
    %c0_i32 = arith.constant 0 : i32
    %c0_i32_0 = arith.constant 0 : i32
    %c0_i32_1 = arith.constant 0 : i32
    return %c0_i32, %c0_i32_0 : i32, i32
  }
  func.func @transform_4(%arg0: i32, %arg1: i32) -> (i32, i32) {
    %c0_i32 = arith.constant 0 : i32
    %c0_i32_0 = arith.constant 0 : i32
    %c0_i32_1 = arith.constant 0 : i32
    return %c0_i32, %c0_i32_0 : i32, i32
  }
  func.func @transform_5(%arg0: i32, %arg1: i32) -> (i32, i32) {
    %c0_i32 = arith.constant 0 : i32
    %c0_i32_0 = arith.constant 0 : i32
    return %arg0, %c0_i32 : i32, i32
  }
}

</mosaic_0001>

<llo_original>
// kernel: tpu_custom_call.1
$region0: #{tpu_custom_call.1}
  #allocation0 [shape = 'u32[]', space=smem, size = 0x4, offset = 0x4, fixed_abs, tag = 'smem constant byte address 0x4 - core index']
  #allocation1 [shape = 'u32[72,128]{1,0:T(1,128)}', space=vmem, size = 0x9000, scoped, tag = 'internal scratch']
  #allocation2 [shape = 'f32[16,256]{1,0:T(8,128)}', space=vmem, size = 0x4000, scoped, tag = 'scratch operand']
  #allocation12 [shape = 's32[]', space=sflag, size = 0x4, offset = 0, fixed_abs, tag = 'sflag constant byte address 0x0 - dummy sync flag']
  %s0 = inlined_call_operand.hbm [shape: bf16[16,32,256], index: 0, kind: input, shape index: {}]
  %s1 = inlined_call_operand.hbm [shape: bf16[256,256], index: 1, kind: input, shape index: {}]
  %s2 = inlined_call_operand.hbm [shape: f32[1,256], index: 2, kind: input, shape index: {}]
  %s3 = inlined_call_operand.hbm [shape: bf16[256,128], index: 3, kind: input, shape index: {}]
  %s4 = inlined_call_operand.vmem [shape: f32[1,128], index: 4, kind: input, shape index: {}]
  %s5 = inlined_call_operand.hbm [shape: f32[16,128], index: 5, kind: output, shape index: {}]
  %s6 = sld [smem:[#allocation0]]
  $region77: #{tpu_custom_call.1} parent=0
    _
  %s8 = ssub.s32 1, %s6
  %s9 = scalar_select 0, %s8, %s6
  $region1: #{tpu_custom_call.1} parent=0
    #allocation3 [shape = 'u8[262144]{0}', space=vmem, size = 0x40000, scoped, tag = 'input window, operand 0']
    #allocation4 [shape = 's32[2]{0}', space=sflag, size = 0x8, scoped, tag = 'scoped memory for tpu_custom_call.1']
    #allocation5 [shape = 's32[2]{0}', space=sflag, size = 0x8, scoped, tag = 'scoped memory for tpu_custom_call.1']
    #allocation6 [shape = 'u8[131072]{0}', space=vmem, size = 0x20000, scoped, tag = 'input window, operand 1, single buffered']
    #allocation7 [shape = 's32[1]{0}', space=sflag, size = 0x4, scoped, tag = 'scoped memory for tpu_custom_call.1']
    #allocation8 [shape = 'u8[1024]{0}', space=vmem, size = 0x400, scoped, tag = 'input window, operand 2, single buffered']
    #allocation9 [shape = 'u8[65536]{0}', space=vmem, size = 0x10000, scoped, tag = 'input window, operand 3, single buffered']
    #allocation10 [shape = 's32[1]{0}', space=sflag, size = 0x4, scoped, tag = 'scoped memory for tpu_custom_call.1']
    #allocation11 [shape = 'u8[8192]{0}', space=vmem, size = 0x2000, scoped, tag = 'output window, operand 0, single buffered']
    %10 = vsyncpa [#allocation4], 0
    %s11 = scalar_lea.sflag [#allocation4], 1
    %12 = vsyncpa %s11, 0
    %13 = vsyncpa [#allocation7], 0
    %14 = vsyncpa [#allocation10], 0
    %15 = vsyncpa [#allocation5], 0
    loop: start=0, step=1, limit=4
    $region2: #{tpu_custom_call.1} parent=1 // loop_pre_header
      _
    $region3: #{tpu_custom_call.1} parent=1 // loop_header
      %s17 = sphi 0, %s21
      %p18 = scmp.ge.s32.totalorder %s17, 4
      %s24 = sphi 0, %s36
      %s25 = sphi 0, %s32
      %s26 = sphi 0, %s24
      %s27 = sphi 0, %s25
      %s28 = sphi 0, %s26
      %s29 = sphi 0, %s27
      %s41 = sphi 0, %s43
      %s44 = sphi 0, %s41
      %s45 = sphi 0, %s44
      %s61 = sphi 0, %s45
      %s65 = sphi 0, %s65
      %s67 = sphi 0, %s65
      %s68 = sphi 0, %s67
      %s82 = sphi 0, %s68
      %s86 = sphi 0, %s86
      %s88 = sphi 0, %s86
      %s89 = sphi 0, %s88
      %s103 = sphi 0, %s89
      %s107 = sphi 0, %s107
      %s109 = sphi 0, %s107
      %s110 = sphi 0, %s109
      %s124 = sphi 0, %s110
      %s128 = sphi 0, %s128
      %s130 = sphi 0, %s128
      %s131 = sphi 0, %s130
      %s145 = sphi 0, %s131
      %s151 = sphi 0, %s153
      %s154 = sphi 0, %s151
      %s155 = sphi 0, %s154
      %s171 = sphi 0, %s155
    $region4: #{tpu_custom_call.1} parent=1 // loop_header_branch
      %20 = sbr.rel (%p18) target = $region8
    $region5: #{tpu_custom_call.1} parent=1 // loop_body
      %s22 = ssub.s32 %s17, 1
      %s23 = ssub.s32 %s17, 2
      %s30 = sadd.s32 1, %s25
      %p31 = scmp.ge.s32.totalorder %s30, 2
      %s32 = scalar_select %p31, 0, %s30
      %s33 = sadd.s32 1, %s24
      %s34 = scalar_select %p31, %s33, %s24
      %p35 = scmp.ge.s32.totalorder %s34, 1
      %s36 = scalar_select %p35, 0, %s34
      %s37 = ssub.s32 %s24, %s36
      %s38 = ssub.s32 %s25, %s32
      %s39 = sor.u32 %s37, %s38
      %p40 = scmp.eq.s32.totalorder %s39, 0
      %s42 = sadd.s32 %s41, 1
      %s43 = scalar_select %p40, %s41, %s42
      %p46 = pneg %p40
      %p47 = scmp.eq.s32.totalorder %s17, 1
      %p48 = por %p46, %p47
      %p49 = scmp.ne.s32.totalorder %s41, %s44
      %p50 = scmp.eq.s32.totalorder %s17, 0
      %p51 = por %p49, %p50
      %p52 = scmp.ne.s32.totalorder %s41, %s44
      %p53 = scmp.eq.s32.totalorder %s22, 1
      %p54 = por %p52, %p53
      %p55 = scmp.ne.s32.totalorder %s44, %s45
      %p56 = scmp.eq.s32.totalorder %s22, 0
      %p57 = por %p55, %p56
      %p58 = scmp.ne.s32.totalorder %s44, %s45
      %p59 = scmp.eq.s32.totalorder %s23, 1
      %p60 = por %p58, %p59
      %p62 = scmp.ne.s32.totalorder %s45, %s61
      %p63 = scmp.eq.s32.totalorder %s23, 0
      %p64 = por %p62, %p63
      %s66 = sadd.s32 %s65, 1
      %p69 = scmp.eq.s32.totalorder %s17, 1
      %p70 = scmp.ne.s32.totalorder %s65, %s67
      %p71 = scmp.eq.s32.totalorder %s17, 0
      %p72 = por %p70, %p71
      %p73 = scmp.ne.s32.totalorder %s65, %s67
      %p74 = scmp.eq.s32.totalorder %s22, 1
      %p75 = por %p73, %p74
      %p76 = scmp.ne.s32.totalorder %s67, %s68
      %p77 = scmp.eq.s32.totalorder %s22, 0
      %p78 = por %p76, %p77
      %p79 = scmp.ne.s32.totalorder %s67, %s68
      %p80 = scmp.eq.s32.totalorder %s23, 1
      %p81 = por %p79, %p80
      %p83 = scmp.ne.s32.totalorder %s68, %s82
      %p84 = scmp.eq.s32.totalorder %s23, 0
      %p85 = por %p83, %p84
      %s87 = sadd.s32 %s86, 1
      %p90 = scmp.eq.s32.totalorder %s17, 1
      %p91 = scmp.ne.s32.totalorder %s86, %s88
      %p92 = scmp.eq.s32.totalorder %s17, 0
      %p93 = por %p91, %p92
      %p94 = scmp.ne.s32.totalorder %s86, %s88
      %p95 = scmp.eq.s32.totalorder %s22, 1
      %p96 = por %p94, %p95
      %p97 = scmp.ne.s32.totalorder %s88, %s89
      %p98 = scmp.eq.s32.totalorder %s22, 0
      %p99 = por %p97, %p98
      %p100 = scmp.ne.s32.totalorder %s88, %s89
      %p101 = scmp.eq.s32.totalorder %s23, 1
      %p102 = por %p100, %p101
      %p104 = scmp.ne.s32.totalorder %s89, %s103
      %p105 = scmp.eq.s32.totalorder %s23, 0
      %p106 = por %p104, %p105
      %s108 = sadd.s32 %s107, 1
      %p111 = scmp.eq.s32.totalorder %s17, 1
      %p112 = scmp.ne.s32.totalorder %s107, %s109
      %p113 = scmp.eq.s32.totalorder %s17, 0
      %p114 = por %p112, %p113
      %p115 = scmp.ne.s32.totalorder %s107, %s109
      %p116 = scmp.eq.s32.totalorder %s22, 1
      %p117 = por %p115, %p116
      %p118 = scmp.ne.s32.totalorder %s109, %s110
      %p119 = scmp.eq.s32.totalorder %s22, 0
      %p120 = por %p118, %p119
      %p121 = scmp.ne.s32.totalorder %s109, %s110
      %p122 = scmp.eq.s32.totalorder %s23, 1
      %p123 = por %p121, %p122
      %p125 = scmp.ne.s32.totalorder %s110, %s124
      %p126 = scmp.eq.s32.totalorder %s23, 0
      %p127 = por %p125, %p126
      %s129 = sadd.s32 %s128, 1
      %p132 = scmp.eq.s32.totalorder %s17, 1
      %p133 = scmp.ne.s32.totalorder %s128, %s130
      %p134 = scmp.eq.s32.totalorder %s17, 0
      %p135 = por %p133, %p134
      %p136 = scmp.ne.s32.totalorder %s128, %s130
      %p137 = scmp.eq.s32.totalorder %s22, 1
      %p138 = por %p136, %p137
      %p139 = scmp.ne.s32.totalorder %s130, %s131
      %p140 = scmp.eq.s32.totalorder %s22, 0
      %p141 = por %p139, %p140
      %p142 = scmp.ne.s32.totalorder %s130, %s131
      %p143 = scmp.eq.s32.totalorder %s23, 1
      %p144 = por %p142, %p143
      %p146 = scmp.ne.s32.totalorder %s131, %s145
      %p147 = scmp.eq.s32.totalorder %s23, 0
      %p148 = por %p146, %p147
      %s149 = ssub.s32 %s24, %s36
      %p150 = scmp.eq.s32.totalorder %s149, 0
      %s152 = sadd.s32 %s151, 1
      %s153 = scalar_select %p150, %s151, %s152
      %p156 = pneg %p150
      %p157 = scmp.eq.s32.totalorder %s17, 1
      %p158 = por %p156, %p157
      %p159 = scmp.ne.s32.totalorder %s151, %s154
      %p160 = scmp.eq.s32.totalorder %s17, 0
      %p161 = por %p159, %p160
      %p162 = scmp.ne.s32.totalorder %s151, %s154
      %p163 = scmp.eq.s32.totalorder %s22, 1
      %p164 = por %p162, %p163
      %p165 = scmp.ne.s32.totalorder %s154, %s155
      %p166 = scmp.eq.s32.totalorder %s22, 0
      %p167 = por %p165, %p166
      %p168 = scmp.ne.s32.totalorder %s154, %s155
      %p169 = scmp.eq.s32.totalorder %s23, 1
      %p170 = por %p168, %p169
      %p172 = scmp.ne.s32.totalorder %s155, %s171
      %p173 = scmp.eq.s32.totalorder %s23, 0
      %p174 = por %p172, %p173
      %p175 = scmp.le.s32.totalorder 1, %s17
      %p176 = scmp.lt.s32.totalorder %s17, 3
      %p177 = pnand %p175, %p176
      %p178 = pneg %p177
      // Predicated region
      $region9: #{tpu_custom_call.1} parent=5 // pred_check
        _
      $region10: #{tpu_custom_call.1} parent=5 // pred_check_branch
        %180 = sbr.rel (%p177) target = $region12
      $region11: #{tpu_custom_call.1} parent=5 // pred_region
        %s181 = ssub.s32 %s17, 1
        // Predicated region
        $region13: #{tpu_custom_call.1} parent=11 // pred_check
          %p182 = pneg %p78
        $region14: #{tpu_custom_call.1} parent=11 // pred_check_branch
          %184 = sbr.rel (%p182) target = $region16
        $region15: #{tpu_custom_call.1} parent=11 // pred_region
          %186 = vsyncadd [#allocation7], 0
          %s187 = sshll.u32 %s1, 4
          %s188 = int_to_ptr.hbm [resolvable:$true] %s187
          %s189 = sshll.u32 [#allocation6], 4
          %s190 = int_to_ptr.vmem [resolvable:$true] %s189
          %195 = dma.hbm_to_vmem [thread:$0]  %s188, 4096, %s190, [#allocation7], 128, 128, 8
        $region16: #{tpu_custom_call.1} parent=11 // pred_fallthru
          _
        // Predicated region
        $region17: #{tpu_custom_call.1} parent=11 // pred_check
          %p196 = pneg %p99
        $region18: #{tpu_custom_call.1} parent=11 // pred_check_branch
          %198 = sbr.rel (%p196) target = $region20
        $region19: #{tpu_custom_call.1} parent=11 // pred_region
          %200 = vsyncadd [#allocation7], 0
          %s202 = sshll.u32 %s2, 4
          %s203 = int_to_ptr.hbm [resolvable:$true] %s202
          %s204 = sshll.u32 [#allocation8], 4
          %s205 = int_to_ptr.vmem [resolvable:$true] %s204
          %207 = dma.hbm_to_vmem [thread:$0]  %s203, 32, %s205, [#allocation7]
        $region20: #{tpu_custom_call.1} parent=11 // pred_fallthru
          _
        // Predicated region
        $region21: #{tpu_custom_call.1} parent=11 // pred_check
          %p208 = pneg %p120
        $region22: #{tpu_custom_call.1} parent=11 // pred_check_branch
          %210 = sbr.rel (%p208) target = $region24
        $region23: #{tpu_custom_call.1} parent=11 // pred_region
          %212 = vsyncadd [#allocation10], 0
          %s213 = sshll.u32 %s3, 4
          %s214 = int_to_ptr.hbm [resolvable:$true] %s213
          %s215 = sshll.u32 [#allocation9], 4
          %s216 = int_to_ptr.vmem [resolvable:$true] %s215
          %221 = dma.hbm_to_vmem [thread:$0]  %s214, 2048, %s216, [#allocation10], 64, 64, 4
        $region24: #{tpu_custom_call.1} parent=11 // pred_fallthru
          _
        // Predicated region
        $region25: #{tpu_custom_call.1} parent=11 // pred_check
          %p222 = pneg %p141
        $region26: #{tpu_custom_call.1} parent=11 // pred_check_branch
          %224 = sbr.rel (%p222) target = $region28
        $region27: #{tpu_custom_call.1} parent=11 // pred_region
          _
        $region28: #{tpu_custom_call.1} parent=11 // pred_fallthru
          _
      $region12: #{tpu_custom_call.1} parent=5 // pred_fallthru
        _
      %p225 = scmp.lt.s32.totalorder %s17, 2
      // Predicated region
      $region29: #{tpu_custom_call.1} parent=5 // pred_check
        %p226 = pneg %p225
      $region30: #{tpu_custom_call.1} parent=5 // pred_check_branch
        %228 = sbr.rel (%p226) target = $region32
      $region31: #{tpu_custom_call.1} parent=5 // pred_region
        // Predicated region
        $region33: #{tpu_custom_call.1} parent=31 // pred_check
          %p229 = pneg %p51
        $region34: #{tpu_custom_call.1} parent=31 // pred_check_branch
          %231 = sbr.rel (%p229) target = $region36
        $region35: #{tpu_custom_call.1} parent=31 // pred_region
          #allocation13 [shape = 'u32[6]{0}', space=smem, size = 0x18, scoped, tag = 'DMA stride descriptor']
          %s232 = sand.u32 %s41, 1
          %s233 = scalar_lea.sflag [#allocation4], %s232
          %s234 = sand.u32 %s41, 1
          %s235 = smul.addr %s234, 256
          %s236 = scalar_lea.vmem [#allocation3], %s235
          %s237 = smul.u32 16, %s24
          %s238 = smul.u32 2, %s25
          %240 = vsyncadd %s233, 0
          %s241 = smul.addr %s238, 2
          %s242 = smul.addr %s237, 8
          %s243 = sadd.s32 %s241, %s242
          %s244 = smul.addr %s243, 4
          %s245 = scalar_lea.hbm %s0, %s244
          %s247 = sshll.u32 1, 14
          %s248 = sxor.u32 4294967295, %s247
          %s250 = sld [smem:[#allocation0]]
          %s251 = sadd.s32 2, %s250
          %s253 = sshll.u32 7, 26
          %s254 = sxor.u32 4294967295, %s253
          %s255 = sand.u32 0, %s254
          %s256 = sshll.u32 %s251, 26
          %s257 = sor.u32 %s255, %s256
          %s258 = sshll.u32 %s245, 4
          %s259 = int_to_ptr.hbm [resolvable:$true] %s258
          %s260 = sshll.u32 %s236, 4
          %s261 = int_to_ptr.vmem [resolvable:$true] %s260
          %267 = sst [smem:[#allocation13]] 512
          %s268 = scalar_lea.smem [#allocation13], 1
          %269 = sst [smem:[%s268]] 256
          %s270 = scalar_lea.smem [#allocation13], 2
          %271 = sst [smem:[%s270]] 2
          %s272 = scalar_lea.smem [#allocation13], 3
          %273 = sst [smem:[%s272]] 128
          %s274 = scalar_lea.smem [#allocation13], 4
          %275 = sst [smem:[%s274]] 128
          %s276 = scalar_lea.smem [#allocation13], 5
          %277 = sst [smem:[%s276]] 8
          %279 = dma.general %s259, 4096, %s261, %s233, [#allocation12], [#allocation13], %s257, 0
        $region36: #{tpu_custom_call.1} parent=31 // pred_fallthru
          _
      $region32: #{tpu_custom_call.1} parent=5 // pred_fallthru
        _
      %p280 = scmp.le.s32.totalorder 1, %s17
      %p281 = scmp.lt.s32.totalorder %s17, 3
      %p282 = pnand %p280, %p281
      %p283 = pneg %p282
      // Predicated region
      $region37: #{tpu_custom_call.1} parent=5 // pred_check
        _
      $region38: #{tpu_custom_call.1} parent=5 // pred_check_branch
        %285 = sbr.rel (%p282) target = $region40
      $region39: #{tpu_custom_call.1} parent=5 // pred_region
        %s286 = ssub.s32 %s17, 1
        %s287 = sand.u32 %s44, 1
        %s288 = scalar_lea.sflag [#allocation4], %s287
        %s289 = sand.u32 %s44, 1
        %s290 = smul.addr %s289, 256
        %s291 = scalar_lea.vmem [#allocation3], %s290
        // Predicated region
        $region41: #{tpu_custom_call.1} parent=39 // pred_check
          %p292 = pneg %p57
        $region42: #{tpu_custom_call.1} parent=39 // pred_check_branch
          %294 = sbr.rel (%p292) target = $region44
        $region43: #{tpu_custom_call.1} parent=39 // pred_region
          %296 = dma.done %s288, 4096
        $region44: #{tpu_custom_call.1} parent=39 // pred_fallthru
          _
        // Predicated region
        $region45: #{tpu_custom_call.1} parent=39 // pred_check
          %p297 = pneg %p78
        $region46: #{tpu_custom_call.1} parent=39 // pred_check_branch
          %299 = sbr.rel (%p297) target = $region48
        $region47: #{tpu_custom_call.1} parent=39 // pred_region
          %301 = dma.done [#allocation7], 4096
        $region48: #{tpu_custom_call.1} parent=39 // pred_fallthru
          _
        // Predicated region
        $region49: #{tpu_custom_call.1} parent=39 // pred_check
          %p302 = pneg %p99
        $region50: #{tpu_custom_call.1} parent=39 // pred_check_branch
          %304 = sbr.rel (%p302) target = $region52
        $region51: #{tpu_custom_call.1} parent=39 // pred_region
          %306 = dma.done [#allocation7], 32
        $region52: #{tpu_custom_call.1} parent=39 // pred_fallthru
          _
        // Predicated region
        $region53: #{tpu_custom_call.1} parent=39 // pred_check
          %p307 = pneg %p120
        $region54: #{tpu_custom_call.1} parent=39 // pred_check_branch
          %309 = sbr.rel (%p307) target = $region56
        $region55: #{tpu_custom_call.1} parent=39 // pred_region
          %311 = dma.done [#allocation10], 2048
        $region56: #{tpu_custom_call.1} parent=39 // pred_fallthru
          _
        %s312 = sand.u32 %s44, 1
        %s313 = scalar_lea.sflag [#allocation4], %s312
        %s314 = sand.u32 %s44, 1
        %s315 = smul.addr %s314, 256
        %s316 = scalar_lea.vmem [#allocation3], %s315
        %p317 = pneg %p57
        %p318 = pneg %p54
        %p319 = pneg %p78
        %p320 = pneg %p75
        %p321 = pneg %p99
        %p322 = pneg %p96
        %p323 = pneg %p120
        %p324 = pneg %p117
        %p325 = pneg %p141
        %p326 = pneg %p138
        %p327 = pneg %p167
        %p328 = pneg %p164
        %s329 = smul.u32 16, %s26
        %s330 = smul.u32 2, %s27
        %s331 = smul.u32 2, %s26
        %p332 = scmp.eq.s32.totalorder %s27, 0
        // Predicated region
        $region57: #{tpu_custom_call.1} parent=39 // pred_check
          %p333 = pneg %p332
        $region58: #{tpu_custom_call.1} parent=39 // pred_check_branch
          %335 = sbr.rel (%p333) target = $region60
        $region59: #{tpu_custom_call.1} parent=39 // pred_region
          %336 = vst [vmem:[#allocation2] sm:$0xff] 0.0
          %337 = vst [vmem:[#allocation2 + $0x8] sm:$0xff] 0.0
          %338 = vst [vmem:[#allocation2 + $0x10] sm:$0xff] 0.0
          %339 = vst [vmem:[#allocation2 + $0x18] sm:$0xff] 0.0
        $region60: #{tpu_custom_call.1} parent=39 // pred_fallthru
          _
        %v340 = vld [vmem:[%s291] sm:$0xff]
        %v341 = vld [vmem:[%s291 + $0x10] sm:$0xff]
        %v342 = vld [vmem:[%s291 + $0x20] sm:$0xff]
        %v343 = vld [vmem:[%s291 + $0x30] sm:$0xff]
        %v344 = vld [vmem:[%s291 + $0x40] sm:$0xff]
        %v345 = vld [vmem:[%s291 + $0x50] sm:$0xff]
        %v346 = vld [vmem:[%s291 + $0x60] sm:$0xff]
        %v347 = vld [vmem:[%s291 + $0x70] sm:$0xff]
        %v348 = vld [vmem:[%s291 + $0x80] sm:$0xff]
        %v349 = vld [vmem:[%s291 + $0x90] sm:$0xff]
        %v350 = vld [vmem:[%s291 + $0xa0] sm:$0xff]
        %v351 = vld [vmem:[%s291 + $0xb0] sm:$0xff]
        %v352 = vld [vmem:[%s291 + $0xc0] sm:$0xff]
        %v353 = vld [vmem:[%s291 + $0xd0] sm:$0xff]
        %v354 = vld [vmem:[%s291 + $0xe0] sm:$0xff]
        %v355 = vld [vmem:[%s291 + $0xf0] sm:$0xff]
        %v356 = vunpack.c.l.bf16 %v340
        %v357 = vunpack.c.h.bf16 %v340
        %v358 = vunpack.c.l.bf16 %v341
        %v359 = vunpack.c.h.bf16 %v341
        %v360 = vunpack.c.l.bf16 %v342
        %v361 = vunpack.c.h.bf16 %v342
        %v362 = vunpack.c.l.bf16 %v343
        %v363 = vunpack.c.h.bf16 %v343
        %v364 = vunpack.c.l.bf16 %v344
        %v365 = vunpack.c.h.bf16 %v344
        %v366 = vunpack.c.l.bf16 %v345
        %v367 = vunpack.c.h.bf16 %v345
        %v368 = vunpack.c.l.bf16 %v346
        %v369 = vunpack.c.h.bf16 %v346
        %v370 = vunpack.c.l.bf16 %v347
        %v371 = vunpack.c.h.bf16 %v347
        %v372 = vunpack.c.l.bf16 %v348
        %v373 = vunpack.c.h.bf16 %v348
        %v374 = vunpack.c.l.bf16 %v349
        %v375 = vunpack.c.h.bf16 %v349
        %v376 = vunpack.c.l.bf16 %v350
        %v377 = vunpack.c.h.bf16 %v350
        %v378 = vunpack.c.l.bf16 %v351
        %v379 = vunpack.c.h.bf16 %v351
        %v380 = vunpack.c.l.bf16 %v352
        %v381 = vunpack.c.h.bf16 %v352
        %v382 = vunpack.c.l.bf16 %v353
        %v383 = vunpack.c.h.bf16 %v353
        %v384 = vunpack.c.l.bf16 %v354
        %v385 = vunpack.c.h.bf16 %v354
        %v386 = vunpack.c.l.bf16 %v355
        %v387 = vunpack.c.h.bf16 %v355
        %v388 = vrot.slane %v356, 4
        %v389 = vadd.f32 %v356, %v388
        %v390 = vrot.slane %v389, 2
        %v391 = vadd.f32 %v389, %v390
        %v392 = vrot.slane %v391, 1
        %v393 = vadd.f32 %v391, %v392
        %v394 = vrot.slane %v357, 4
        %v395 = vadd.f32 %v357, %v394
        %v396 = vrot.slane %v395, 2
        %v397 = vadd.f32 %v395, %v396
        %v398 = vrot.slane %v397, 1
        %v399 = vadd.f32 %v397, %v398
        %v400 = vrot.slane %v358, 4
        %v401 = vadd.f32 %v358, %v400
        %v402 = vrot.slane %v401, 2
        %v403 = vadd.f32 %v401, %v402
        %v404 = vrot.slane %v403, 1
        %v405 = vadd.f32 %v403, %v404
        %v406 = vrot.slane %v359, 4
        %v407 = vadd.f32 %v359, %v406
        %v408 = vrot.slane %v407, 2
        %v409 = vadd.f32 %v407, %v408
        %v410 = vrot.slane %v409, 1
        %v411 = vadd.f32 %v409, %v410
        %v412 = vrot.slane %v360, 4
        %v413 = vadd.f32 %v360, %v412
        %v414 = vrot.slane %v413, 2
        %v415 = vadd.f32 %v413, %v414
        %v416 = vrot.slane %v415, 1
        %v417 = vadd.f32 %v415, %v416
        %v418 = vrot.slane %v361, 4
        %v419 = vadd.f32 %v361, %v418
        %v420 = vrot.slane %v419, 2
        %v421 = vadd.f32 %v419, %v420
        %v422 = vrot.slane %v421, 1
        %v423 = vadd.f32 %v421, %v422
        %v424 = vrot.slane %v362, 4
        %v425 = vadd.f32 %v362, %v424
        %v426 = vrot.slane %v425, 2
        %v427 = vadd.f32 %v425, %v426
        %v428 = vrot.slane %v427, 1
        %v429 = vadd.f32 %v427, %v428
        %v430 = vrot.slane %v363, 4
        %v431 = vadd.f32 %v363, %v430
        %v432 = vrot.slane %v431, 2
        %v433 = vadd.f32 %v431, %v432
        %v434 = vrot.slane %v433, 1
        %v435 = vadd.f32 %v433, %v434
        %v436 = vrot.slane %v364, 4
        %v437 = vadd.f32 %v364, %v436
        %v438 = vrot.slane %v437, 2
        %v439 = vadd.f32 %v437, %v438
        %v440 = vrot.slane %v439, 1
        %v441 = vadd.f32 %v439, %v440
        %v442 = vrot.slane %v365, 4
        %v443 = vadd.f32 %v365, %v442
        %v444 = vrot.slane %v443, 2
        %v445 = vadd.f32 %v443, %v444
        %v446 = vrot.slane %v445, 1
        %v447 = vadd.f32 %v445, %v446
        %v448 = vrot.slane %v366, 4
        %v449 = vadd.f32 %v366, %v448
        %v450 = vrot.slane %v449, 2
        %v451 = vadd.f32 %v449, %v450
        %v452 = vrot.slane %v451, 1
        %v453 = vadd.f32 %v451, %v452
        %v454 = vrot.slane %v367, 4
        %v455 = vadd.f32 %v367, %v454
        %v456 = vrot.slane %v455, 2
        %v457 = vadd.f32 %v455, %v456
        %v458 = vrot.slane %v457, 1
        %v459 = vadd.f32 %v457, %v458
        %v460 = vrot.slane %v368, 4
        %v461 = vadd.f32 %v368, %v460
        %v462 = vrot.slane %v461, 2
        %v463 = vadd.f32 %v461, %v462
        %v464 = vrot.slane %v463, 1
        %v465 = vadd.f32 %v463, %v464
        %v466 = vrot.slane %v369, 4
        %v467 = vadd.f32 %v369, %v466
        %v468 = vrot.slane %v467, 2
        %v469 = vadd.f32 %v467, %v468
        %v470 = vrot.slane %v469, 1
        %v471 = vadd.f32 %v469, %v470
        %v472 = vrot.slane %v370, 4
        %v473 = vadd.f32 %v370, %v472
        %v474 = vrot.slane %v473, 2
        %v475 = vadd.f32 %v473, %v474
        %v476 = vrot.slane %v475, 1
        %v477 = vadd.f32 %v475, %v476
        %v478 = vrot.slane %v371, 4
        %v479 = vadd.f32 %v371, %v478
        %v480 = vrot.slane %v479, 2
        %v481 = vadd.f32 %v479, %v480
        %v482 = vrot.slane %v481, 1
        %v483 = vadd.f32 %v481, %v482
        %v484 = vrot.slane %v372, 4
        %v485 = vadd.f32 %v372, %v484
        %v486 = vrot.slane %v485, 2
        %v487 = vadd.f32 %v485, %v486
        %v488 = vrot.slane %v487, 1
        %v489 = vadd.f32 %v487, %v488
        %v490 = vrot.slane %v373, 4
        %v491 = vadd.f32 %v373, %v490
        %v492 = vrot.slane %v491, 2
        %v493 = vadd.f32 %v491, %v492
        %v494 = vrot.slane %v493, 1
        %v495 = vadd.f32 %v493, %v494
        %v496 = vrot.slane %v374, 4
        %v497 = vadd.f32 %v374, %v496
        %v498 = vrot.slane %v497, 2
        %v499 = vadd.f32 %v497, %v498
        %v500 = vrot.slane %v499, 1
        %v501 = vadd.f32 %v499, %v500
        %v502 = vrot.slane %v375, 4
        %v503 = vadd.f32 %v375, %v502
        %v504 = vrot.slane %v503, 2
        %v505 = vadd.f32 %v503, %v504
        %v506 = vrot.slane %v505, 1
        %v507 = vadd.f32 %v505, %v506
        %v508 = vrot.slane %v376, 4
        %v509 = vadd.f32 %v376, %v508
        %v510 = vrot.slane %v509, 2
        %v511 = vadd.f32 %v509, %v510
        %v512 = vrot.slane %v511, 1
        %v513 = vadd.f32 %v511, %v512
        %v514 = vrot.slane %v377, 4
        %v515 = vadd.f32 %v377, %v514
        %v516 = vrot.slane %v515, 2
        %v517 = vadd.f32 %v515, %v516
        %v518 = vrot.slane %v517, 1
        %v519 = vadd.f32 %v517, %v518
        %v520 = vrot.slane %v378, 4
        %v521 = vadd.f32 %v378, %v520
        %v522 = vrot.slane %v521, 2
        %v523 = vadd.f32 %v521, %v522
        %v524 = vrot.slane %v523, 1
        %v525 = vadd.f32 %v523, %v524
        %v526 = vrot.slane %v379, 4
        %v527 = vadd.f32 %v379, %v526
        %v528 = vrot.slane %v527, 2
        %v529 = vadd.f32 %v527, %v528
        %v530 = vrot.slane %v529, 1
        %v531 = vadd.f32 %v529, %v530
        %v532 = vrot.slane %v380, 4
        %v533 = vadd.f32 %v380, %v532
        %v534 = vrot.slane %v533, 2
        %v535 = vadd.f32 %v533, %v534
        %v536 = vrot.slane %v535, 1
        %v537 = vadd.f32 %v535, %v536
        %v538 = vrot.slane %v381, 4
        %v539 = vadd.f32 %v381, %v538
        %v540 = vrot.slane %v539, 2
        %v541 = vadd.f32 %v539, %v540
        %v542 = vrot.slane %v541, 1
        %v543 = vadd.f32 %v541, %v542
        %v544 = vrot.slane %v382, 4
        %v545 = vadd.f32 %v382, %v544
        %v546 = vrot.slane %v545, 2
        %v547 = vadd.f32 %v545, %v546
        %v548 = vrot.slane %v547, 1
        %v549 = vadd.f32 %v547, %v548
        %v550 = vrot.slane %v383, 4
        %v551 = vadd.f32 %v383, %v550
        %v552 = vrot.slane %v551, 2
        %v553 = vadd.f32 %v551, %v552
        %v554 = vrot.slane %v553, 1
        %v555 = vadd.f32 %v553, %v554
        %v556 = vrot.slane %v384, 4
        %v557 = vadd.f32 %v384, %v556
        %v558 = vrot.slane %v557, 2
        %v559 = vadd.f32 %v557, %v558
        %v560 = vrot.slane %v559, 1
        %v561 = vadd.f32 %v559, %v560
        %v562 = vrot.slane %v385, 4
        %v563 = vadd.f32 %v385, %v562
        %v564 = vrot.slane %v563, 2
        %v565 = vadd.f32 %v563, %v564
        %v566 = vrot.slane %v565, 1
        %v567 = vadd.f32 %v565, %v566
        %v568 = vrot.slane %v386, 4
        %v569 = vadd.f32 %v386, %v568
        %v570 = vrot.slane %v569, 2
        %v571 = vadd.f32 %v569, %v570
        %v572 = vrot.slane %v571, 1
        %v573 = vadd.f32 %v571, %v572
        %v574 = vrot.slane %v387, 4
        %v575 = vadd.f32 %v387, %v574
        %v576 = vrot.slane %v575, 2
        %v577 = vadd.f32 %v575, %v576
        %v578 = vrot.slane %v577, 1
        %v579 = vadd.f32 %v577, %v578
        %v580 = vld [vmem:[%s291 + $0x8] sm:$0xff]
        %v581 = vld [vmem:[%s291 + $0x18] sm:$0xff]
        %v582 = vld [vmem:[%s291 + $0x28] sm:$0xff]
        %v583 = vld [vmem:[%s291 + $0x38] sm:$0xff]
        %v584 = vld [vmem:[%s291 + $0x48] sm:$0xff]
        %v585 = vld [vmem:[%s291 + $0x58] sm:$0xff]
        %v586 = vld [vmem:[%s291 + $0x68] sm:$0xff]
        %v587 = vld [vmem:[%s291 + $0x78] sm:$0xff]
        %v588 = vld [vmem:[%s291 + $0x88] sm:$0xff]
        %v589 = vld [vmem:[%s291 + $0x98] sm:$0xff]
        %v590 = vld [vmem:[%s291 + $0xa8] sm:$0xff]
        %v591 = vld [vmem:[%s291 + $0xb8] sm:$0xff]
        %v592 = vld [vmem:[%s291 + $0xc8] sm:$0xff]
        %v593 = vld [vmem:[%s291 + $0xd8] sm:$0xff]
        %v594 = vld [vmem:[%s291 + $0xe8] sm:$0xff]
        %v595 = vld [vmem:[%s291 + $0xf8] sm:$0xff]
        %v596 = vunpack.c.l.bf16 %v580
        %v597 = vunpack.c.h.bf16 %v580
        %v598 = vunpack.c.l.bf16 %v581
        %v599 = vunpack.c.h.bf16 %v581
        %v600 = vunpack.c.l.bf16 %v582
        %v601 = vunpack.c.h.bf16 %v582
        %v602 = vunpack.c.l.bf16 %v583
        %v603 = vunpack.c.h.bf16 %v583
        %v604 = vunpack.c.l.bf16 %v584
        %v605 = vunpack.c.h.bf16 %v584
        %v606 = vunpack.c.l.bf16 %v585
        %v607 = vunpack.c.h.bf16 %v585
        %v608 = vunpack.c.l.bf16 %v586
        %v609 = vunpack.c.h.bf16 %v586
        %v610 = vunpack.c.l.bf16 %v587
        %v611 = vunpack.c.h.bf16 %v587
        %v612 = vunpack.c.l.bf16 %v588
        %v613 = vunpack.c.h.bf16 %v588
        %v614 = vunpack.c.l.bf16 %v589
        %v615 = vunpack.c.h.bf16 %v589
        %v616 = vunpack.c.l.bf16 %v590
        %v617 = vunpack.c.h.bf16 %v590
        %v618 = vunpack.c.l.bf16 %v591
        %v619 = vunpack.c.h.bf16 %v591
        %v620 = vunpack.c.l.bf16 %v592
        %v621 = vunpack.c.h.bf16 %v592
        %v622 = vunpack.c.l.bf16 %v593
        %v623 = vunpack.c.h.bf16 %v593
        %v624 = vunpack.c.l.bf16 %v594
        %v625 = vunpack.c.h.bf16 %v594
        %v626 = vunpack.c.l.bf16 %v595
        %v627 = vunpack.c.h.bf16 %v595
        %v628 = vrot.slane %v596, 4
        %v629 = vadd.f32 %v596, %v628
        %v630 = vrot.slane %v629, 2
        %v631 = vadd.f32 %v629, %v630
        %v632 = vrot.slane %v631, 1
        %v633 = vadd.f32 %v631, %v632
        %v634 = vrot.slane %v597, 4
        %v635 = vadd.f32 %v597, %v634
        %v636 = vrot.slane %v635, 2
        %v637 = vadd.f32 %v635, %v636
        %v638 = vrot.slane %v637, 1
        %v639 = vadd.f32 %v637, %v638
        %v640 = vrot.slane %v598, 4
        %v641 = vadd.f32 %v598, %v640
        %v642 = vrot.slane %v641, 2
        %v643 = vadd.f32 %v641, %v642
        %v644 = vrot.slane %v643, 1
        %v645 = vadd.f32 %v643, %v644
        %v646 = vrot.slane %v599, 4
        %v647 = vadd.f32 %v599, %v646
        %v648 = vrot.slane %v647, 2
        %v649 = vadd.f32 %v647, %v648
        %v650 = vrot.slane %v649, 1
        %v651 = vadd.f32 %v649, %v650
        %v652 = vrot.slane %v600, 4
        %v653 = vadd.f32 %v600, %v652
        %v654 = vrot.slane %v653, 2
        %v655 = vadd.f32 %v653, %v654
        %v656 = vrot.slane %v655, 1
        %v657 = vadd.f32 %v655, %v656
        %v658 = vrot.slane %v601, 4
        %v659 = vadd.f32 %v601, %v658
        %v660 = vrot.slane %v659, 2
        %v661 = vadd.f32 %v659, %v660
        %v662 = vrot.slane %v661, 1
        %v663 = vadd.f32 %v661, %v662
        %v664 = vrot.slane %v602, 4
        %v665 = vadd.f32 %v602, %v664
        %v666 = vrot.slane %v665, 2
        %v667 = vadd.f32 %v665, %v666
        %v668 = vrot.slane %v667, 1
        %v669 = vadd.f32 %v667, %v668
        %v670 = vrot.slane %v603, 4
        %v671 = vadd.f32 %v603, %v670
        %v672 = vrot.slane %v671, 2
        %v673 = vadd.f32 %v671, %v672
        %v674 = vrot.slane %v673, 1
        %v675 = vadd.f32 %v673, %v674
        %v676 = vrot.slane %v604, 4
        %v677 = vadd.f32 %v604, %v676
        %v678 = vrot.slane %v677, 2
        %v679 = vadd.f32 %v677, %v678
        %v680 = vrot.slane %v679, 1
        %v681 = vadd.f32 %v679, %v680
        %v682 = vrot.slane %v605, 4
        %v683 = vadd.f32 %v605, %v682
        %v684 = vrot.slane %v683, 2
        %v685 = vadd.f32 %v683, %v684
        %v686 = vrot.slane %v685, 1
        %v687 = vadd.f32 %v685, %v686
        %v688 = vrot.slane %v606, 4
        %v689 = vadd.f32 %v606, %v688
        %v690 = vrot.slane %v689, 2
        %v691 = vadd.f32 %v689, %v690
        %v692 = vrot.slane %v691, 1
        %v693 = vadd.f32 %v691, %v692
        %v694 = vrot.slane %v607, 4
        %v695 = vadd.f32 %v607, %v694
        %v696 = vrot.slane %v695, 2
        %v697 = vadd.f32 %v695, %v696
        %v698 = vrot.slane %v697, 1
        %v699 = vadd.f32 %v697, %v698
        %v700 = vrot.slane %v608, 4
        %v701 = vadd.f32 %v608, %v700
        %v702 = vrot.slane %v701, 2
        %v703 = vadd.f32 %v701, %v702
        %v704 = vrot.slane %v703, 1
        %v705 = vadd.f32 %v703, %v704
        %v706 = vrot.slane %v609, 4
        %v707 = vadd.f32 %v609, %v706
        %v708 = vrot.slane %v707, 2
        %v709 = vadd.f32 %v707, %v708
        %v710 = vrot.slane %v709, 1
        %v711 = vadd.f32 %v709, %v710
        %v712 = vrot.slane %v610, 4
        %v713 = vadd.f32 %v610, %v712
        %v714 = vrot.slane %v713, 2
        %v715 = vadd.f32 %v713, %v714
        %v716 = vrot.slane %v715, 1
        %v717 = vadd.f32 %v715, %v716
        %v718 = vrot.slane %v611, 4
        %v719 = vadd.f32 %v611, %v718
        %v720 = vrot.slane %v719, 2
        %v721 = vadd.f32 %v719, %v720
        %v722 = vrot.slane %v721, 1
        %v723 = vadd.f32 %v721, %v722
        %v724 = vrot.slane %v612, 4
        %v725 = vadd.f32 %v612, %v724
        %v726 = vrot.slane %v725, 2
        %v727 = vadd.f32 %v725, %v726
        %v728 = vrot.slane %v727, 1
        %v729 = vadd.f32 %v727, %v728
        %v730 = vrot.slane %v613, 4
        %v731 = vadd.f32 %v613, %v730
        %v732 = vrot.slane %v731, 2
        %v733 = vadd.f32 %v731, %v732
        %v734 = vrot.slane %v733, 1
        %v735 = vadd.f32 %v733, %v734
        %v736 = vrot.slane %v614, 4
        %v737 = vadd.f32 %v614, %v736
        %v738 = vrot.slane %v737, 2
        %v739 = vadd.f32 %v737, %v738
        %v740 = vrot.slane %v739, 1
        %v741 = vadd.f32 %v739, %v740
        %v742 = vrot.slane %v615, 4
        %v743 = vadd.f32 %v615, %v742
        %v744 = vrot.slane %v743, 2
        %v745 = vadd.f32 %v743, %v744
        %v746 = vrot.slane %v745, 1
        %v747 = vadd.f32 %v745, %v746
        %v748 = vrot.slane %v616, 4
        %v749 = vadd.f32 %v616, %v748
        %v750 = vrot.slane %v749, 2
        %v751 = vadd.f32 %v749, %v750
        %v752 = vrot.slane %v751, 1
        %v753 = vadd.f32 %v751, %v752
        %v754 = vrot.slane %v617, 4
        %v755 = vadd.f32 %v617, %v754
        %v756 = vrot.slane %v755, 2
        %v757 = vadd.f32 %v755, %v756
        %v758 = vrot.slane %v757, 1
        %v759 = vadd.f32 %v757, %v758
        %v760 = vrot.slane %v618, 4
        %v761 = vadd.f32 %v618, %v760
        %v762 = vrot.slane %v761, 2
        %v763 = vadd.f32 %v761, %v762
        %v764 = vrot.slane %v763, 1
        %v765 = vadd.f32 %v763, %v764
        %v766 = vrot.slane %v619, 4
        %v767 = vadd.f32 %v619, %v766
        %v768 = vrot.slane %v767, 2
        %v769 = vadd.f32 %v767, %v768
        %v770 = vrot.slane %v769, 1
        %v771 = vadd.f32 %v769, %v770
        %v772 = vrot.slane %v620, 4
        %v773 = vadd.f32 %v620, %v772
        %v774 = vrot.slane %v773, 2
        %v775 = vadd.f32 %v773, %v774
        %v776 = vrot.slane %v775, 1
        %v777 = vadd.f32 %v775, %v776
        %v778 = vrot.slane %v621, 4
        %v779 = vadd.f32 %v621, %v778
        %v780 = vrot.slane %v779, 2
        %v781 = vadd.f32 %v779, %v780
        %v782 = vrot.slane %v781, 1
        %v783 = vadd.f32 %v781, %v782
        %v784 = vrot.slane %v622, 4
        %v785 = vadd.f32 %v622, %v784
        %v786 = vrot.slane %v785, 2
        %v787 = vadd.f32 %v785, %v786
        %v788 = vrot.slane %v787, 1
        %v789 = vadd.f32 %v787, %v788
        %v790 = vrot.slane %v623, 4
        %v791 = vadd.f32 %v623, %v790
        %v792 = vrot.slane %v791, 2
        %v793 = vadd.f32 %v791, %v792
        %v794 = vrot.slane %v793, 1
        %v795 = vadd.f32 %v793, %v794
        %v796 = vrot.slane %v624, 4
        %v797 = vadd.f32 %v624, %v796
        %v798 = vrot.slane %v797, 2
        %v799 = vadd.f32 %v797, %v798
        %v800 = vrot.slane %v799, 1
        %v801 = vadd.f32 %v799, %v800
        %v802 = vrot.slane %v625, 4
        %v803 = vadd.f32 %v625, %v802
        %v804 = vrot.slane %v803, 2
        %v805 = vadd.f32 %v803, %v804
        %v806 = vrot.slane %v805, 1
        %v807 = vadd.f32 %v805, %v806
        %v808 = vrot.slane %v626, 4
        %v809 = vadd.f32 %v626, %v808
        %v810 = vrot.slane %v809, 2
        %v811 = vadd.f32 %v809, %v810
        %v812 = vrot.slane %v811, 1
        %v813 = vadd.f32 %v811, %v812
        %v814 = vrot.slane %v627, 4
        %v815 = vadd.f32 %v627, %v814
        %v816 = vrot.slane %v815, 2
        %v817 = vadd.f32 %v815, %v816
        %v818 = vrot.slane %v817, 1
        %v819 = vadd.f32 %v817, %v818
        %v820 = vadd.f32 %v393, %v633
        %v821 = vadd.f32 %v399, %v639
        %v822 = vadd.f32 %v405, %v645
        %v823 = vadd.f32 %v411, %v651
        %v824 = vadd.f32 %v417, %v657
        %v825 = vadd.f32 %v423, %v663
        %v826 = vadd.f32 %v429, %v669
        %v827 = vadd.f32 %v435, %v675
        %v828 = vadd.f32 %v441, %v681
        %v829 = vadd.f32 %v447, %v687
        %v830 = vadd.f32 %v453, %v693
        %v831 = vadd.f32 %v459, %v699
        %v832 = vadd.f32 %v465, %v705
        %v833 = vadd.f32 %v471, %v711
        %v834 = vadd.f32 %v477, %v717
        %v835 = vadd.f32 %v483, %v723
        %v836 = vadd.f32 %v489, %v729
        %v837 = vadd.f32 %v495, %v735
        %v838 = vadd.f32 %v501, %v741
        %v839 = vadd.f32 %v507, %v747
        %v840 = vadd.f32 %v513, %v753
        %v841 = vadd.f32 %v519, %v759
        %v842 = vadd.f32 %v525, %v765
        %v843 = vadd.f32 %v531, %v771
        %v844 = vadd.f32 %v537, %v777
        %v845 = vadd.f32 %v543, %v783
        %v846 = vadd.f32 %v549, %v789
        %v847 = vadd.f32 %v555, %v795
        %v848 = vadd.f32 %v561, %v801
        %v849 = vadd.f32 %v567, %v807
        %v850 = vadd.f32 %v573, %v813
        %v851 = vadd.f32 %v579, %v819
        %v852 = vld [vmem:[#allocation2] sm:$0xff]
        %v853 = vld [vmem:[#allocation2 + $0x8] sm:$0xff]
        %v854 = vld [vmem:[#allocation2 + $0x10] sm:$0xff]
        %v855 = vld [vmem:[#allocation2 + $0x18] sm:$0xff]
        %vm888 = vcmask 1041409
        %v889 = vsel %vm888, %v822, %v820
        %vm890 = vcmask 1042434
        %v891 = vsel %vm890, %v824, %v889
        %vm892 = vcmask 1043459
        %v893 = vsel %vm892, %v826, %v891
        %vm894 = vcmask 1044484
        %v895 = vsel %vm894, %v828, %v893
        %vm896 = vcmask 1045509
        %v897 = vsel %vm896, %v830, %v895
        %vm898 = vcmask 1046534
        %v899 = vsel %vm898, %v832, %v897
        %vm900 = vcmask 1047559
        %v901 = vsel %vm900, %v834, %v899
        %v902 = vsel %vm888, %v823, %v821
        %v903 = vsel %vm890, %v825, %v902
        %v904 = vsel %vm892, %v827, %v903
        %v905 = vsel %vm894, %v829, %v904
        %v906 = vsel %vm896, %v831, %v905
        %v907 = vsel %vm898, %v833, %v906
        %v908 = vsel %vm900, %v835, %v907
        %v909 = vsel %vm888, %v838, %v836
        %v910 = vsel %vm890, %v840, %v909
        %v911 = vsel %vm892, %v842, %v910
        %v912 = vsel %vm894, %v844, %v911
        %v913 = vsel %vm896, %v846, %v912
        %v914 = vsel %vm898, %v848, %v913
        %v915 = vsel %vm900, %v850, %v914
        %v916 = vsel %vm888, %v839, %v837
        %v917 = vsel %vm890, %v841, %v916
        %v918 = vsel %vm892, %v843, %v917
        %v919 = vsel %vm894, %v845, %v918
        %v920 = vsel %vm896, %v847, %v919
        %v921 = vsel %vm898, %v849, %v920
        %v922 = vsel %vm900, %v851, %v921
        %v927 = vadd.f32 %v852, %v901
        %v928 = vadd.f32 %v853, %v908
        %v929 = vadd.f32 %v854, %v915
        %v930 = vadd.f32 %v855, %v922
        %931 = vst [vmem:[#allocation2] sm:$0xff] %v927
        %932 = vst [vmem:[#allocation2 + $0x8] sm:$0xff] %v928
        %933 = vst [vmem:[#allocation2 + $0x10] sm:$0xff] %v929
        %934 = vst [vmem:[#allocation2 + $0x18] sm:$0xff] %v930
        %p935 = scmp.eq.s32.totalorder %s27, 1
        // Predicated region
        $region61: #{tpu_custom_call.1} parent=39 // pred_check
          %p936 = pneg %p935
        $region62: #{tpu_custom_call.1} parent=39 // pred_check_branch
          %938 = sbr.rel (%p936) target = $region64
        $region63: #{tpu_custom_call.1} parent=39 // pred_region
          %v939 = vld [vmem:[#allocation2] sm:$0xff]
          %v940 = vld [vmem:[#allocation2 + $0x8] sm:$0xff]
          %v941 = vld [vmem:[#allocation2 + $0x10] sm:$0xff]
          %v942 = vld [vmem:[#allocation2 + $0x18] sm:$0xff]
          %v943 = vpack.c.bf16 %v941, %v939
          %v944 = vpack.c.bf16 %v942, %v940
          %v945 = vld [vmem:[#allocation6] sm:$0xff]
          %v946 = vld [vmem:[#allocation6 + $0x8] sm:$0xff]
          %v947 = vld [vmem:[#allocation6 + $0x10] sm:$0xff]
          %v948 = vld [vmem:[#allocation6 + $0x18] sm:$0xff]
          %v949 = vld [vmem:[#allocation6 + $0x20] sm:$0xff]
          %v950 = vld [vmem:[#allocation6 + $0x28] sm:$0xff]
          %v951 = vld [vmem:[#allocation6 + $0x30] sm:$0xff]
          %v952 = vld [vmem:[#allocation6 + $0x38] sm:$0xff]
          %v953 = vld [vmem:[#allocation6 + $0x40] sm:$0xff]
          %v954 = vld [vmem:[#allocation6 + $0x48] sm:$0xff]
          %v955 = vld [vmem:[#allocation6 + $0x50] sm:$0xff]
          %v956 = vld [vmem:[#allocation6 + $0x58] sm:$0xff]
          %v957 = vld [vmem:[#allocation6 + $0x60] sm:$0xff]
          %v958 = vld [vmem:[#allocation6 + $0x68] sm:$0xff]
          %v959 = vld [vmem:[#allocation6 + $0x70] sm:$0xff]
          %v960 = vld [vmem:[#allocation6 + $0x78] sm:$0xff]
          %v961 = vld [vmem:[#allocation6 + $0x80] sm:$0xff]
          %v962 = vld [vmem:[#allocation6 + $0x88] sm:$0xff]
          %v963 = vld [vmem:[#allocation6 + $0x90] sm:$0xff]
          %v964 = vld [vmem:[#allocation6 + $0x98] sm:$0xff]
          %v965 = vld [vmem:[#allocation6 + $0xa0] sm:$0xff]
          %v966 = vld [vmem:[#allocation6 + $0xa8] sm:$0xff]
          %v967 = vld [vmem:[#allocation6 + $0xb0] sm:$0xff]
          %v968 = vld [vmem:[#allocation6 + $0xb8] sm:$0xff]
          %v969 = vld [vmem:[#allocation6 + $0xc0] sm:$0xff]
          %v970 = vld [vmem:[#allocation6 + $0xc8] sm:$0xff]
          %v971 = vld [vmem:[#allocation6 + $0xd0] sm:$0xff]
          %v972 = vld [vmem:[#allocation6 + $0xd8] sm:$0xff]
          %v973 = vld [vmem:[#allocation6 + $0xe0] sm:$0xff]
          %v974 = vld [vmem:[#allocation6 + $0xe8] sm:$0xff]
          %v975 = vld [vmem:[#allocation6 + $0xf0] sm:$0xff]
          %v976 = vld [vmem:[#allocation6 + $0xf8] sm:$0xff]
          %v977 = vld [vmem:[#allocation8] sm:$0x3]
          %v979 = vperm.slane %v977, 0
          %v980 = vperm.slane %v977, 1
          %v1015 = vunpack.c.l.b16 %v945
          %v1016 = vunpack.c.h.b16 %v945
          %v1017 = vunpack.c.l.b16 %v946
          %v1018 = vunpack.c.h.b16 %v946
          %v1019 = vunpack.c.l.b16 %v947
          %v1020 = vunpack.c.h.b16 %v947
          %v1021 = vunpack.c.l.b16 %v948
          %v1022 = vunpack.c.h.b16 %v948
          %v1023 = vunpack.c.l.b16 %v949
          %v1024 = vunpack.c.h.b16 %v949
          %v1025 = vunpack.c.l.b16 %v950
          %v1026 = vunpack.c.h.b16 %v950
          %v1027 = vunpack.c.l.b16 %v951
          %v1028 = vunpack.c.h.b16 %v951
          %v1029 = vunpack.c.l.b16 %v952
          %v1030 = vunpack.c.h.b16 %v952
          %v1031 = vunpack.c.l.b16 %v953
          %v1032 = vunpack.c.h.b16 %v953
          %v1033 = vunpack.c.l.b16 %v954
          %v1034 = vunpack.c.h.b16 %v954
          %v1035 = vunpack.c.l.b16 %v955
          %v1036 = vunpack.c.h.b16 %v955
          %v1037 = vunpack.c.l.b16 %v956
          %v1038 = vunpack.c.h.b16 %v956
          %v1039 = vunpack.c.l.b16 %v957
          %v1040 = vunpack.c.h.b16 %v957
          %v1041 = vunpack.c.l.b16 %v958
          %v1042 = vunpack.c.h.b16 %v958
          %v1043 = vunpack.c.l.b16 %v959
          %v1044 = vunpack.c.h.b16 %v959
          %v1045 = vunpack.c.l.b16 %v960
          %v1046 = vunpack.c.h.b16 %v960
          %v1047 = vunpack.c.l.b16 %v961
          %v1048 = vunpack.c.h.b16 %v961
          %v1049 = vunpack.c.l.b16 %v962
          %v1050 = vunpack.c.h.b16 %v962
          %v1051 = vunpack.c.l.b16 %v963
          %v1052 = vunpack.c.h.b16 %v963
          %v1053 = vunpack.c.l.b16 %v964
          %v1054 = vunpack.c.h.b16 %v964
          %v1055 = vunpack.c.l.b16 %v965
          %v1056 = vunpack.c.h.b16 %v965
          %v1057 = vunpack.c.l.b16 %v966
          %v1058 = vunpack.c.h.b16 %v966
          %v1059 = vunpack.c.l.b16 %v967
          %v1060 = vunpack.c.h.b16 %v967
          %v1061 = vunpack.c.l.b16 %v968
          %v1062 = vunpack.c.h.b16 %v968
          %v1063 = vunpack.c.l.b16 %v969
          %v1064 = vunpack.c.h.b16 %v969
          %v1065 = vunpack.c.l.b16 %v970
          %v1066 = vunpack.c.h.b16 %v970
          %v1067 = vunpack.c.l.b16 %v971
          %v1068 = vunpack.c.h.b16 %v971
          %v1069 = vunpack.c.l.b16 %v972
          %v1070 = vunpack.c.h.b16 %v972
          %v1071 = vunpack.c.l.b16 %v973
          %v1072 = vunpack.c.h.b16 %v973
          %v1073 = vunpack.c.l.b16 %v974
          %v1074 = vunpack.c.h.b16 %v974
          %v1075 = vunpack.c.l.b16 %v975
          %v1076 = vunpack.c.h.b16 %v975
          %v1077 = vunpack.c.l.b16 %v976
          %v1078 = vunpack.c.h.b16 %v976
          %v1079 = vpack.c.b16 %v1017, %v1015
          %v1080 = vpack.c.b16 %v1018, %v1016
          %v1081 = vpack.c.b16 %v1021, %v1019
          %v1082 = vpack.c.b16 %v1022, %v1020
          %v1083 = vpack.c.b16 %v1025, %v1023
          %v1084 = vpack.c.b16 %v1026, %v1024
          %v1085 = vpack.c.b16 %v1029, %v1027
          %v1086 = vpack.c.b16 %v1030, %v1028
          %v1087 = vpack.c.b16 %v1033, %v1031
          %v1088 = vpack.c.b16 %v1034, %v1032
          %v1089 = vpack.c.b16 %v1037, %v1035
          %v1090 = vpack.c.b16 %v1038, %v1036
          %v1091 = vpack.c.b16 %v1041, %v1039
          %v1092 = vpack.c.b16 %v1042, %v1040
          %v1093 = vpack.c.b16 %v1045, %v1043
          %v1094 = vpack.c.b16 %v1046, %v1044
          %v1095 = vpack.c.b16 %v1049, %v1047
          %v1096 = vpack.c.b16 %v1050, %v1048
          %v1097 = vpack.c.b16 %v1053, %v1051
          %v1098 = vpack.c.b16 %v1054, %v1052
          %v1099 = vpack.c.b16 %v1057, %v1055
          %v1100 = vpack.c.b16 %v1058, %v1056
          %v1101 = vpack.c.b16 %v1061, %v1059
          %v1102 = vpack.c.b16 %v1062, %v1060
          %v1103 = vpack.c.b16 %v1065, %v1063
          %v1104 = vpack.c.b16 %v1066, %v1064
          %v1105 = vpack.c.b16 %v1069, %v1067
          %v1106 = vpack.c.b16 %v1070, %v1068
          %v1107 = vpack.c.b16 %v1073, %v1071
          %v1108 = vpack.c.b16 %v1074, %v1072
          %v1109 = vpack.c.b16 %v1077, %v1075
          %v1110 = vpack.c.b16 %v1078, %v1076
          %1143 = vmatpush.bf16.msra.mxu0 %v1093
          %1144 = vmatpush.bf16.msra.mxu0 %v1091
          %1145 = vmatpush.bf16.msra.mxu0 %v1089
          %1146 = vmatpush.bf16.msra.mxu0 %v1087
          %1147 = vmatpush.bf16.msra.mxu0 %v1085
          %1148 = vmatpush.bf16.msra.mxu0 %v1083
          %1149 = vmatpush.bf16.msra.mxu0 %v1081
          %1150 = vmatpush.bf16.msra.mxu0 %v1079
          %1151 = vmatmul.bf16.gmra.mxu0 %v943
          %v1152 = vpop.f32.mrf.mxu0
          %v1153 = vadd.f32 %v979, %v1152
          %v1154 = vpop.f32.mrf.mxu0
          %v1155 = vadd.f32 %v979, %v1154
          %1156 = vdwg.mxu0
          %1157 = vmatpush.bf16.msra.mxu0 %v1109
          %1158 = vmatpush.bf16.msra.mxu0 %v1107
          %1159 = vmatpush.bf16.msra.mxu0 %v1105
          %1160 = vmatpush.bf16.msra.mxu0 %v1103
          %1161 = vmatpush.bf16.msra.mxu0 %v1101
          %1162 = vmatpush.bf16.msra.mxu0 %v1099
          %1163 = vmatpush.bf16.msra.mxu0 %v1097
          %1164 = vmatpush.bf16.msra.mxu0 %v1095
          %1165 = vmatmul.bf16.gmra.mxu0 %v944
          %v1166 = vpop.f32.mrf.mxu0
          %v1167 = vadd.f32 %v1153, %v1166
          %v1168 = vpop.f32.mrf.mxu0
          %v1169 = vadd.f32 %v1155, %v1168
          %1170 = vdwg.mxu0
          %1171 = vmatpush.bf16.msra.mxu0 %v1094
          %1172 = vmatpush.bf16.msra.mxu0 %v1092
          %1173 = vmatpush.bf16.msra.mxu0 %v1090
          %1174 = vmatpush.bf16.msra.mxu0 %v1088
          %1175 = vmatpush.bf16.msra.mxu0 %v1086
          %1176 = vmatpush.bf16.msra.mxu0 %v1084
          %1177 = vmatpush.bf16.msra.mxu0 %v1082
          %1178 = vmatpush.bf16.msra.mxu0 %v1080
          %1179 = vmatmul.bf16.gmra.mxu0 %v943
          %v1180 = vpop.f32.mrf.mxu0
          %v1181 = vadd.f32 %v980, %v1180
          %v1182 = vpop.f32.mrf.mxu0
          %v1183 = vadd.f32 %v980, %v1182
          %1184 = vdwg.mxu0
          %1185 = vmatpush.bf16.msra.mxu0 %v1110
          %1186 = vmatpush.bf16.msra.mxu0 %v1108
          %1187 = vmatpush.bf16.msra.mxu0 %v1106
          %1188 = vmatpush.bf16.msra.mxu0 %v1104
          %1189 = vmatpush.bf16.msra.mxu0 %v1102
          %1190 = vmatpush.bf16.msra.mxu0 %v1100
          %1191 = vmatpush.bf16.msra.mxu0 %v1098
          %1192 = vmatpush.bf16.msra.mxu0 %v1096
          %1193 = vmatmul.bf16.gmra.mxu0 %v944
          %v1194 = vpop.f32.mrf.mxu0
          %v1195 = vadd.f32 %v1181, %v1194
          %v1196 = vpop.f32.mrf.mxu0
          %v1197 = vadd.f32 %v1183, %v1196
          %1198 = vdwg.mxu0
          %v1199 = vmax.f32 %v1167, 0.0
          %v1200 = vmax.f32 %v1195, 0.0
          %v1201 = vmax.f32 %v1169, 0.0
          %v1202 = vmax.f32 %v1197, 0.0
          %v1203 = vpack.c.bf16 %v1201, %v1199
          %v1204 = vpack.c.bf16 %v1202, %v1200
          %v1205 = vld [vmem:[#allocation9] sm:$0xf]
          %v1206 = vld [vmem:[#allocation9 + $0x4] sm:$0xf]
          %v1207 = vld [vmem:[#allocation9 + $0x8] sm:$0xf]
          %v1208 = vld [vmem:[#allocation9 + $0xc] sm:$0xf]
          %v1209 = vld [vmem:[#allocation9 + $0x10] sm:$0xf]
          %v1210 = vld [vmem:[#allocation9 + $0x14] sm:$0xf]
          %v1211 = vld [vmem:[#allocation9 + $0x18] sm:$0xf]
          %v1212 = vld [vmem:[#allocation9 + $0x1c] sm:$0xf]
          %v1213 = vld [vmem:[#allocation9 + $0x20] sm:$0xf]
          %v1214 = vld [vmem:[#allocation9 + $0x24] sm:$0xf]
          %v1215 = vld [vmem:[#allocation9 + $0x28] sm:$0xf]
          %v1216 = vld [vmem:[#allocation9 + $0x2c] sm:$0xf]
          %v1217 = vld [vmem:[#allocation9 + $0x30] sm:$0xf]
          %v1218 = vld [vmem:[#allocation9 + $0x34] sm:$0xf]
          %v1219 = vld [vmem:[#allocation9 + $0x38] sm:$0xf]
          %v1220 = vld [vmem:[#allocation9 + $0x3c] sm:$0xf]
          %v1221 = vld [vmem:[#allocation9 + $0x40] sm:$0xf]
          %v1222 = vld [vmem:[#allocation9 + $0x44] sm:$0xf]
          %v1223 = vld [vmem:[#allocation9 + $0x48] sm:$0xf]
          %v1224 = vld [vmem:[#allocation9 + $0x4c] sm:$0xf]
          %v1225 = vld [vmem:[#allocation9 + $0x50] sm:$0xf]
          %v1226 = vld [vmem:[#allocation9 + $0x54] sm:$0xf]
          %v1227 = vld [vmem:[#allocation9 + $0x58] sm:$0xf]
          %v1228 = vld [vmem:[#allocation9 + $0x5c] sm:$0xf]
          %v1229 = vld [vmem:[#allocation9 + $0x60] sm:$0xf]
          %v1230 = vld [vmem:[#allocation9 + $0x64] sm:$0xf]
          %v1231 = vld [vmem:[#allocation9 + $0x68] sm:$0xf]
          %v1232 = vld [vmem:[#allocation9 + $0x6c] sm:$0xf]
          %v1233 = vld [vmem:[#allocation9 + $0x70] sm:$0xf]
          %v1234 = vld [vmem:[#allocation9 + $0x74] sm:$0xf]
          %v1235 = vld [vmem:[#allocation9 + $0x78] sm:$0xf]
          %v1236 = vld [vmem:[#allocation9 + $0x7c] sm:$0xf]
          %v1237 = vld [vmem:[%s4] sm:$0x1]
          %v1239 = vperm.slane %v1237, 0
          %v1273 = vunpack.c.l.b16 %v1205
          %v1274 = vunpack.c.l.b16 %v1206
          %v1275 = vunpack.c.l.b16 %v1207
          %v1276 = vunpack.c.l.b16 %v1208
          %v1277 = vunpack.c.l.b16 %v1209
          %v1278 = vunpack.c.l.b16 %v1210
          %v1279 = vunpack.c.l.b16 %v1211
          %v1280 = vunpack.c.l.b16 %v1212
          %v1281 = vunpack.c.l.b16 %v1213
          %v1282 = vunpack.c.l.b16 %v1214
          %v1283 = vunpack.c.l.b16 %v1215
          %v1284 = vunpack.c.l.b16 %v1216
          %v1285 = vunpack.c.l.b16 %v1217
          %v1286 = vunpack.c.l.b16 %v1218
          %v1287 = vunpack.c.l.b16 %v1219
          %v1288 = vunpack.c.l.b16 %v1220
          %v1289 = vunpack.c.l.b16 %v1221
          %v1290 = vunpack.c.l.b16 %v1222
          %v1291 = vunpack.c.l.b16 %v1223
          %v1292 = vunpack.c.l.b16 %v1224
          %v1293 = vunpack.c.l.b16 %v1225
          %v1294 = vunpack.c.l.b16 %v1226
          %v1295 = vunpack.c.l.b16 %v1227
          %v1296 = vunpack.c.l.b16 %v1228
          %v1297 = vunpack.c.l.b16 %v1229
          %v1298 = vunpack.c.l.b16 %v1230
          %v1299 = vunpack.c.l.b16 %v1231
          %v1300 = vunpack.c.l.b16 %v1232
          %v1301 = vunpack.c.l.b16 %v1233
          %v1302 = vunpack.c.l.b16 %v1234
          %v1303 = vunpack.c.l.b16 %v1235
          %v1304 = vunpack.c.l.b16 %v1236
          %v1305 = vpack.c.b16 %v1274, %v1273
          %v1306 = vpack.c.b16 %v1276, %v1275
          %v1307 = vpack.c.b16 %v1278, %v1277
          %v1308 = vpack.c.b16 %v1280, %v1279
          %v1309 = vpack.c.b16 %v1282, %v1281
          %v1310 = vpack.c.b16 %v1284, %v1283
          %v1311 = vpack.c.b16 %v1286, %v1285
          %v1312 = vpack.c.b16 %v1288, %v1287
          %v1313 = vpack.c.b16 %v1290, %v1289
          %v1314 = vpack.c.b16 %v1292, %v1291
          %v1315 = vpack.c.b16 %v1294, %v1293
          %v1316 = vpack.c.b16 %v1296, %v1295
          %v1317 = vpack.c.b16 %v1298, %v1297
          %v1318 = vpack.c.b16 %v1300, %v1299
          %v1319 = vpack.c.b16 %v1302, %v1301
          %v1320 = vpack.c.b16 %v1304, %v1303
          %1337 = vmatpush.bf16.msra.mxu0 %v1312
          %1338 = vmatpush.bf16.msra.mxu0 %v1311
          %1339 = vmatpush.bf16.msra.mxu0 %v1310
          %1340 = vmatpush.bf16.msra.mxu0 %v1309
          %1341 = vmatpush.bf16.msra.mxu0 %v1308
          %1342 = vmatpush.bf16.msra.mxu0 %v1307
          %1343 = vmatpush.bf16.msra.mxu0 %v1306
          %1344 = vmatpush.bf16.msra.mxu0 %v1305
          %1345 = vmatmul.bf16.gmra.mxu0 %v1203
          %v1346 = vpop.f32.mrf.mxu0
          %v1347 = vadd.f32 %v1239, %v1346
          %v1348 = vpop.f32.mrf.mxu0
          %v1349 = vadd.f32 %v1239, %v1348
          %1350 = vdwg.mxu0
          %1351 = vmatpush.bf16.msra.mxu0 %v1320
          %1352 = vmatpush.bf16.msra.mxu0 %v1319
          %1353 = vmatpush.bf16.msra.mxu0 %v1318
          %1354 = vmatpush.bf16.msra.mxu0 %v1317
          %1355 = vmatpush.bf16.msra.mxu0 %v1316
          %1356 = vmatpush.bf16.msra.mxu0 %v1315
          %1357 = vmatpush.bf16.msra.mxu0 %v1314
          %1358 = vmatpush.bf16.msra.mxu0 %v1313
          %1359 = vmatmul.bf16.gmra.mxu0 %v1204
          %v1360 = vpop.f32.mrf.mxu0
          %v1361 = vadd.f32 %v1347, %v1360
          %v1362 = vpop.f32.mrf.mxu0
          %v1363 = vadd.f32 %v1349, %v1362
          %1364 = vdwg.mxu0
          %v1365 = vmul.f32 %v1361, %v1361
          %v1366 = vmul.f32 %v1363, %v1363
          %1367 = vadd.xlane.f32.xlu0 %v1365
          %v1368 = vpop.xlane.xlu0 %1367
          %1369 = vadd.xlane.f32.xlu0 %v1366
          %v1370 = vpop.xlane.xlu0 %1369
          %v1371 = vmax.f32 %v1368, 1e-24
          %v1372 = vmax.f32 %v1370, 1e-24
          %v1373 = vrsqrt.pop %v1371
          %v1374 = vmul.f32 %v1373, %v1371
          %v1375 = vmul.f32 %v1374, %v1373
          %v1376 = vmul.f32 0.5, %v1375
          %v1377 = vsub.f32 1.5, %v1376
          %v1378 = vmul.f32 %v1373, %v1377
          %vm1379 = vweird.f32 %v1371
          %vm1380 = vweird.f32 %v1373
          %vm1381 = vmor %vm1379, %vm1380
          %v1382 = vsel %vm1381, %v1373, %v1378
          %v1383 = vrsqrt.pop %v1372
          %v1384 = vmul.f32 %v1383, %v1372
          %v1385 = vmul.f32 %v1384, %v1383
          %v1386 = vmul.f32 0.5, %v1385
          %v1387 = vsub.f32 1.5, %v1386
          %v1388 = vmul.f32 %v1383, %v1387
          %vm1389 = vweird.f32 %v1372
          %vm1390 = vweird.f32 %v1383
          %vm1391 = vmor %vm1389, %vm1390
          %v1392 = vsel %vm1391, %v1383, %v1388
          %v1393 = vmul.f32 %v1361, %v1382
          %v1394 = vmul.f32 %v1363, %v1392
          %1395 = vst [vmem:[#allocation11] sm:$0xff] %v1393
          %1396 = vst [vmem:[#allocation11 + $0x8] sm:$0xff] %v1394
        $region64: #{tpu_custom_call.1} parent=39 // pred_fallthru
          _
        // Predicated region
        $region65: #{tpu_custom_call.1} parent=39 // pred_check
          %p1397 = pneg %p164
        $region66: #{tpu_custom_call.1} parent=39 // pred_check_branch
          %1399 = sbr.rel (%p1397) target = $region68
        $region67: #{tpu_custom_call.1} parent=39 // pred_region
          %s1400 = smul.u32 2, %s26
          %1402 = vsyncadd [#allocation5], 0
          %s1403 = smul.addr %s1400, 8
          %s1404 = scalar_lea.hbm %s5, %s1403
          %s1405 = sshll.u32 [#allocation11], 4
          %s1406 = int_to_ptr.vmem [resolvable:$true] %s1405
          %s1407 = sshll.u32 %s1404, 4
          %s1408 = int_to_ptr.hbm [resolvable:$true] %s1407
          %1413 = dma.vmem_to_hbm [thread:$0]  %s1406, 256, %s1408, [#allocation5], 128, 128, 8
        $region68: #{tpu_custom_call.1} parent=39 // pred_fallthru
          _
        // Predicated region
        $region69: #{tpu_custom_call.1} parent=39 // pred_check
          %p1414 = pneg %p164
        $region70: #{tpu_custom_call.1} parent=39 // pred_check_branch
          %1416 = sbr.rel (%p1414) target = $region72
        $region71: #{tpu_custom_call.1} parent=39 // pred_region
          %1418 = dma.done [#allocation5], 256
        $region72: #{tpu_custom_call.1} parent=39 // pred_fallthru
          _
      $region40: #{tpu_custom_call.1} parent=5 // pred_fallthru
        _
      %p1419 = scmp.le.s32.totalorder 2, %s17
      // Predicated region
      $region73: #{tpu_custom_call.1} parent=5 // pred_check
        %p1420 = pneg %p1419
      $region74: #{tpu_custom_call.1} parent=5 // pred_check_branch
        %1422 = sbr.rel (%p1420) target = $region76
      $region75: #{tpu_custom_call.1} parent=5 // pred_region
        %s1423 = ssub.s32 %s17, 2
      $region76: #{tpu_custom_call.1} parent=5 // pred_fallthru
        _
    $region6: #{tpu_custom_call.1} parent=1 // loop_footer
      %s21 = sadd.s32 1, %s17
    $region7: #{tpu_custom_call.1} parent=1 // loop_footer_branch
      %16 = sbr.rel target = $region3
    $region8: #{tpu_custom_call.1} parent=1 // loop_exit
      _
    %1424 = vsyncpa [#allocation4], 1
    %s1425 = scalar_lea.sflag [#allocation4], 1
    %1426 = vsyncpa %s1425, 1
    %1427 = vsyncpa [#allocation7], 1
    %1428 = vsyncpa [#allocation10], 1
    %1429 = vsyncpa [#allocation5], 1
    %s1430 = scalar_lea.sflag [#allocation5], 1
    %1431 = vsyncpa %s1430, 1

</llo_original>
